<compile_context>
chip_gen: v7x
topology: tpu7x:2x2x1
jax: 0.10.0
libtpu: 0.0.40
codegen_flags: <defaults>
</compile_context>

<pallas_src>
import jax
import jax.numpy as jnp
from jax.experimental import pallas as pl
from jax.experimental.pallas import tpu as pltpu


def _round_up(x, m):
    return (x + m - 1) // m * m


def _tpu_budget_and_lane():
    """Return (scoped VMEM budget bytes, lane padding multiple) for this chip."""
    vmem_cap = None
    try:
        vmem_cap = int(pltpu.get_tpu_info().vmem_capacity_bytes)
    except Exception:
        vmem_cap = None
    kind = ""
    try:
        kind = jax.devices()[0].device_kind.lower()
    except Exception:
        pass
    if vmem_cap is None:
        # 64 MiB is the v7x floor; v5e/v6e have 128 MiB physical VMEM.
        vmem_cap = 128 * 1024 * 1024 if ("v5" in kind or "v6" in kind) else 64 * 1024 * 1024
    # Leave headroom below physical capacity: ~112 MiB on 128 MiB parts,
    # ~48 MiB on v7x's 64 MiB.
    vmem_limit = min(vmem_cap - 16 * 1024 * 1024, 112 * 1024 * 1024)
    vmem_limit = max(vmem_limit, 32 * 1024 * 1024)
    # v6e/v7x MXUs are 256 wide; v5e's are 128 wide.
    lane_mult = 256 if ("v6" in kind or "v7" in kind) else 128
    return vmem_limit, lane_mult


def _resident_block_spec(block_shape):
    """Weights/biases: constant index_map (no re-DMA across grid steps) and a
    single VMEM buffer instead of the default double-buffer."""
    index_map = lambda i: (0,) * len(block_shape)
    try:
        return pl.BlockSpec(block_shape, index_map, pipeline_mode=pl.Buffered(1))
    except TypeError:
        # Older jax without pipeline_mode: fall back to default double-buffering.
        return pl.BlockSpec(block_shape, index_map)


def _film_kernel(film_ref, tbf_ref, w_fc_ref, b_fc_ref, w_out_ref, b_out_ref,
                 out_ref):
    """One batch tile of FiLM (all feature dims lane-padded).

    film_ref  : (TB, input_dim)        conditioning features (native dtype)
    tbf_ref   : (TB, dim_p)            features being modulated (padded)
    w_fc_ref  : (input_dim, 2*dim_p)   [w_gamma | w_beta], (in, out) layout
    b_fc_ref  : (1, 2*dim_p)           f32 bias [b_gamma | b_beta]
    w_out_ref : (dim_p, out_dim_p)     fc_out weight, (in, out) layout
    b_out_ref : (1, out_dim_p)         f32 fc_out bias
    out_ref   : (TB, out_dim_p)
    """
    dim_p = w_out_ref.shape[0]

    # Fused gamma/beta matmul on the MXU with f32 accumulation. The cast to
    # the stored weight dtype is done in-kernel (cheap VPU, hidden under MXU).
    gb = jnp.dot(film_ref[...].astype(w_fc_ref.dtype), w_fc_ref[...],
                 preferred_element_type=jnp.float32) + b_fc_ref[...]
    gamma = gb[:, :dim_p]          # static, vreg-aligned slice (dim_p % 128 == 0)
    beta = gb[:, dim_p:]

    # FiLM modulation in f32 (safe on v5e's non-bf16 VPU; filler under MXU).
    mid = gamma * tbf_ref[...].astype(jnp.float32) + beta

    # Output projection on the MXU, f32 accumulate. Padded rows of w_out are
    # zero, so the padded columns of `mid` never contribute.
    out = jnp.dot(mid.astype(w_out_ref.dtype), w_out_ref[...],
                  preferred_element_type=jnp.float32) + b_out_ref[...]
    out_ref[...] = out.astype(out_ref.dtype)


def prepare_film_params(raw, compute_dtype=jnp.float32, lane_multiple=None):
    """One-time conversion from nn.Linear layout to kernel-ready padded layout.

    raw: dict with torch-style shapes
      w_fc  (2*dim, input_dim), b_fc (2*dim,)
      w_out (output_dim, dim),  b_out (output_dim,)
    dim and output_dim are zero-padded to `lane_multiple` so in-kernel slices
    are vreg-aligned and the output store is lane-dense (unmasked vst).
    """
    if lane_multiple is None:
        _, lane_multiple = _tpu_budget_and_lane()

    dim = raw["w_out"].shape[1]
    out_dim = raw["w_out"].shape[0]
    input_dim = raw["w_fc"].shape[1]
    dim_p = _round_up(dim, lane_multiple)
    out_dim_p = _round_up(out_dim, lane_multiple)
    pad_d = dim_p - dim
    pad_o = out_dim_p - out_dim

    w_fc = jnp.asarray(raw["w_fc"], jnp.float32)                 # (2*dim, input_dim)
    w_gamma = jnp.pad(w_fc[:dim].T, ((0, 0), (0, pad_d)))        # (input_dim, dim_p)
    w_beta = jnp.pad(w_fc[dim:].T, ((0, 0), (0, pad_d)))         # (input_dim, dim_p)
    w_fc_t = jnp.concatenate([w_gamma, w_beta], axis=1).astype(compute_dtype)

    b_fc = jnp.asarray(raw["b_fc"], jnp.float32)
    b_fc_p = jnp.concatenate([jnp.pad(b_fc[:dim], (0, pad_d)),
                              jnp.pad(b_fc[dim:], (0, pad_d))]).reshape(1, 2 * dim_p)

    w_out_t = jnp.pad(jnp.asarray(raw["w_out"], jnp.float32).T,
                      ((0, pad_d), (0, pad_o))).astype(compute_dtype)   # (dim_p, out_dim_p)
    b_out_p = jnp.pad(jnp.asarray(raw["b_out"], jnp.float32),
                      (0, pad_o)).reshape(1, out_dim_p)

    return {"w_fc_t": w_fc_t, "b_fc": b_fc_p, "w_out_t": w_out_t, "b_out": b_out_p,
            "dims": (input_dim, dim, out_dim), "padded_dims": (dim_p, out_dim_p)}


def _pick_batch_tile(B, input_dim, dim_p, out_dim_p, act_isz, w_isz, out_isz,
                     vmem_limit):
    """Shape-aware batch tile: biggest multiple of 8 whose double-buffered
    streams + resident weights + f32 intermediates fit the VMEM budget."""
    # Resident (single-buffered) weights + f32 biases.
    weight_bytes = (input_dim * 2 * dim_p + dim_p * out_dim_p) * w_isz \
                   + (2 * dim_p + out_dim_p) * 4
    # Per batch row: double-buffered film / tbf / out tiles + f32 intermediates
    # (gb is (., 2*dim_p) f32, mid is (., dim_p) f32).
    per_row = (2 * (input_dim * act_isz + dim_p * act_isz + out_dim_p * out_isz)
               + (2 * dim_p + dim_p) * 4)
    budget = int(vmem_limit * 0.85) - weight_bytes
    # TODO(synk): add a K/N-tiled accumulator fallback (grid over input_dim /
    # 2*dim_p / out_dim_p with pl.when init/finalize) for weights too large to
    # stay resident in VMEM (matters first on v7x's 64 MiB).
    tb_cap = max(budget // per_row, 8)
    tb_cap = (int(tb_cap) // 8) * 8
    if B <= 8:
        return B
    # Guarantee >= 2 grid steps so v7x's second TensorCore gets a share; one
    # extra ~0.35 us grid step is noise on single-core v5e/v6e.
    two_step = _round_up(pl.cdiv(B, 2), 8)
    return max(8, min(tb_cap, two_step, _round_up(B, 8)))


def film_forward(x, y, params, *, x_film=True, out_dtype=None):
    """JAX wrapper reproducing FiLM.forward. Returns (x, y, output)."""
    input_dim, dim, out_dim = params["dims"]
    dim_p, out_dim_p = params["padded_dims"]
    film = x if x_film else y
    to_be_film = y if x_film else x
    assert film.shape[1] == input_dim and to_be_film.shape[1] == dim, (
        "x_film=False only supported when x/y widths match the prepared weights")
    B = film.shape[0]

    compute_dtype = params["w_fc_t"].dtype
    if out_dtype is None:
        out_dtype = compute_dtype      # bf16 path halves output writeback bytes

    # Zero-pad only the modulated-feature axis to the padded width (no-op for
    # lane-aligned dims). Activations keep their native dtype; dtype casts
    # happen inside the kernel.
    if dim_p != dim:
        tbf_p = jnp.pad(to_be_film, ((0, 0), (0, dim_p - dim)))
    else:
        tbf_p = to_be_film

    vmem_limit, _ = _tpu_budget_and_lane()
    act_isz = jnp.dtype(film.dtype).itemsize
    w_isz = jnp.dtype(compute_dtype).itemsize
    out_isz = jnp.dtype(out_dtype).itemsize
    tb = _pick_batch_tile(B, input_dim, dim_p, out_dim_p,
                          act_isz, w_isz, out_isz, vmem_limit)
    grid = (pl.cdiv(B, tb),)

    flops = 2 * B * (input_dim * 2 * dim_p + dim_p * out_dim_p)
    bytes_accessed = (B * input_dim * act_isz + B * dim_p * act_isz
                      + B * out_dim_p * out_isz
                      + input_dim * 2 * dim_p * w_isz + dim_p * out_dim_p * w_isz
                      + (2 * dim_p + out_dim_p) * 4)
    cost = pl.CostEstimate(flops=flops, transcendentals=0,
                           bytes_accessed=bytes_accessed)

    grid_spec = pltpu.PrefetchScalarGridSpec(
        num_scalar_prefetch=0,
        grid=grid,
        in_specs=[
            pl.BlockSpec((tb, input_dim), lambda i: (i, 0)),        # film tile
            pl.BlockSpec((tb, dim_p), lambda i: (i, 0)),            # to_be_film tile
            _resident_block_spec((input_dim, 2 * dim_p)),           # fused fc W
            _resident_block_spec((1, 2 * dim_p)),                   # fc bias
            _resident_block_spec((dim_p, out_dim_p)),               # fc_out W
            _resident_block_spec((1, out_dim_p)),                   # fc_out bias
        ],
        out_specs=pl.BlockSpec((tb, out_dim_p), lambda i: (i, 0)),
    )

    out_p = pl.pallas_call(
        _film_kernel,
        out_shape=jax.ShapeDtypeStruct((B, out_dim_p), out_dtype),
        grid_spec=grid_spec,
        compiler_params=pltpu.CompilerParams(
            dimension_semantics=("parallel",),   # megacore sharding on v7x
            vmem_limit_bytes=vmem_limit,
        ),
        cost_estimate=cost,
    )(film, tbf_p, params["w_fc_t"], params["b_fc"],
      params["w_out_t"], params["b_out"])

    output = out_p[:, :out_dim] if out_dim_p != out_dim else out_p
    return x, y, output


def init_raw_film_params(key, input_dim, dim, output_dim):
    """Deterministic init matching nn.Linear shapes
    (weight: (out_features, in_features), bias: (out_features,))."""
    k1, k2, k3, k4 = jax.random.split(key, 4)
    bound_fc = 1.0 / (input_dim ** 0.5)
    bound_out = 1.0 / (dim ** 0.5)
    return {
        "w_fc": jax.random.uniform(k1, (2 * dim, input_dim), jnp.float32,
                                   -bound_fc, bound_fc),
        "b_fc": jax.random.uniform(k2, (2 * dim,), jnp.float32,
                                   -bound_fc, bound_fc),
        "w_out": jax.random.uniform(k3, (output_dim, dim), jnp.float32,
                                    -bound_out, bound_out),
        "b_out": jax.random.uniform(k4, (output_dim,), jnp.float32,
                                    -bound_out, bound_out),
    }


def film_reference(x, y, raw, *, x_film=True):
    """Pure-JAX reference mirroring the PyTorch forward exactly (f32)."""
    film = x if x_film else y
    to_be_film = y if x_film else x
    dim = raw["w_out"].shape[1]
    fc_out_all = film @ raw["w_fc"].T + raw["b_fc"]
    gamma, beta = fc_out_all[:, :dim], fc_out_all[:, dim:]
    mid = gamma * to_be_film + beta
    output = mid @ raw["w_out"].T + raw["b_out"]
    return x, y, output


if __name__ == "__main__":
    # Small shapes consistent with the module (input_dim == dim, as the
    # reference's split-by-input_dim requires).
    B, INPUT_DIM, DIM, OUTPUT_DIM = 8, 32, 32, 16

    key = jax.random.PRNGKey(0)
    kx, ky, kp = jax.random.split(key, 3)

    x = jax.random.normal(kx, (B, INPUT_DIM), jnp.float32)
    y = jax.random.normal(ky, (B, DIM), jnp.float32)
    raw = init_raw_film_params(kp, INPUT_DIM, DIM, OUTPUT_DIM)

    _, _, out_ref = film_reference(x, y, raw, x_film=True)

    # f32 compute path (bit-faithful to the PyTorch module).
    params_f32 = prepare_film_params(raw, compute_dtype=jnp.float32)
    x_out, y_out, out = film_forward(x, y, params_f32, x_film=True)
    jax.block_until_ready(out)
    assert out.shape == (B, OUTPUT_DIM)
    assert jnp.allclose(out, out_ref, atol=1e-4, rtol=1e-4), "f32 mismatch vs reference"
    assert jnp.array_equal(x_out, x) and jnp.array_equal(y_out, y)

    # bf16 compute path (v6e/v7x MXU-friendly; f32 accumulate, bf16 writeback).
    params_bf16 = prepare_film_params(raw, compute_dtype=jnp.bfloat16)
    _, _, out_bf16 = film_forward(x, y, params_bf16, x_film=True)
    jax.block_until_ready(out_bf16)
    assert out_bf16.shape == (B, OUTPUT_DIM)
    assert jnp.allclose(out_bf16.astype(jnp.float32), out_ref,
                        atol=2e-1, rtol=1e-1), "bf16 mismatch vs reference"

    print("KERNEL_OK")
</pallas_src>

<mosaic_0001>
module attributes {stable_mosaic.version = 11 : i64} {
  func.func @_film_kernel(%arg0: i32, %arg1: memref<8x32xf32, #tpu.memory_space<vmem>>, %arg2: memref<8x128xf32, #tpu.memory_space<vmem>>, %arg3: memref<32x256xf32, #tpu.memory_space<vmem>>, %arg4: memref<1x256xf32, #tpu.memory_space<vmem>>, %arg5: memref<128x128xf32, #tpu.memory_space<vmem>>, %arg6: memref<1x128xf32, #tpu.memory_space<vmem>>, %arg7: memref<8x128xf32, #tpu.memory_space<vmem>>) attributes {dimension_semantics = [#tpu.dimension_semantics<parallel>], iteration_bounds = array<i64: 1>, scalar_prefetch = 0 : i64, scratch_operands = 0 : i64, tpu.core_type = #tpu.core_type<tc>, window_params = [{transform_indices = @transform_0, window_bounds = array<i64: 8, 32>}, {transform_indices = @transform_1, window_bounds = array<i64: 8, 128>}, {pipeline_mode = #tpu.pipeline_mode<synchronous>, transform_indices = @transform_2, window_bounds = array<i64: 32, 256>}, {pipeline_mode = #tpu.pipeline_mode<synchronous>, transform_indices = @transform_3, window_bounds = array<i64: 1, 256>}, {pipeline_mode = #tpu.pipeline_mode<synchronous>, transform_indices = @transform_4, window_bounds = array<i64: 128, 128>}, {pipeline_mode = #tpu.pipeline_mode<synchronous>, transform_indices = @transform_5, window_bounds = array<i64: 1, 128>}, {transform_indices = @transform_6, window_bounds = array<i64: 8, 128>}]} {
    %c0 = arith.constant 0 : index
    %c0_0 = arith.constant 0 : index
    %0 = vector.load %arg1[%c0, %c0_0] : memref<8x32xf32, #tpu.memory_space<vmem>>, vector<8x32xf32>
    %c0_1 = arith.constant 0 : index
    %c0_2 = arith.constant 0 : index
    %1 = vector.load %arg3[%c0_1, %c0_2] : memref<32x256xf32, #tpu.memory_space<vmem>>, vector<32x256xf32>
    %cst = arith.constant dense<0.000000e+00> : vector<8x256xf32>
    %2 = tpu.matmul %0, %1, %cst {dimension_numbers = #tpu.dot_dimension_numbers<[1], [0], [0], [1], [0, 0, 1, 1], [], []>} : vector<8x32xf32>, vector<32x256xf32>, vector<8x256xf32> -> vector<8x256xf32>
    %c0_3 = arith.constant 0 : index
    %c0_4 = arith.constant 0 : index
    %3 = vector.load %arg4[%c0_3, %c0_4] : memref<1x256xf32, #tpu.memory_space<vmem>>, vector<1x256xf32>
    %4 = vector.broadcast %3 : vector<1x256xf32> to vector<8x256xf32>
    %5 = arith.addf %2, %4 : vector<8x256xf32>
    %6 = vector.extract_strided_slice %5 {offsets = [0, 0], sizes = [8, 128], strides = [1, 1]} : vector<8x256xf32> to vector<8x128xf32>
    %7 = vector.extract_strided_slice %5 {offsets = [0, 128], sizes = [8, 128], strides = [1, 1]} : vector<8x256xf32> to vector<8x128xf32>
    %c0_5 = arith.constant 0 : index
    %c0_6 = arith.constant 0 : index
    %8 = vector.load %arg2[%c0_5, %c0_6] : memref<8x128xf32, #tpu.memory_space<vmem>>, vector<8x128xf32>
    %9 = arith.mulf %6, %8 : vector<8x128xf32>
    %10 = arith.addf %9, %7 : vector<8x128xf32>
    %c0_7 = arith.constant 0 : index
    %c0_8 = arith.constant 0 : index
    %11 = vector.load %arg5[%c0_7, %c0_8] : memref<128x128xf32, #tpu.memory_space<vmem>>, vector<128x128xf32>
    %cst_9 = arith.constant dense<0.000000e+00> : vector<8x128xf32>
    %12 = tpu.matmul %10, %11, %cst_9 {dimension_numbers = #tpu.dot_dimension_numbers<[1], [0], [0], [1], [0, 0, 1, 1], [], []>} : vector<8x128xf32>, vector<128x128xf32>, vector<8x128xf32> -> vector<8x128xf32>
    %c0_10 = arith.constant 0 : index
    %c0_11 = arith.constant 0 : index
    %13 = vector.load %arg6[%c0_10, %c0_11] : memref<1x128xf32, #tpu.memory_space<vmem>>, vector<1x128xf32>
    %14 = vector.broadcast %13 : vector<1x128xf32> to vector<8x128xf32>
    %15 = arith.addf %12, %14 : vector<8x128xf32>
    %c0_12 = arith.constant 0 : index
    %c0_13 = arith.constant 0 : index
    %16 = vector.load %arg7[%c0_12, %c0_13] : memref<8x128xf32, #tpu.memory_space<vmem>>, vector<8x128xf32>
    tpu.vector_store %arg7[%c0_12, %c0_13], %15 {strides = array<i32>} : memref<8x128xf32, #tpu.memory_space<vmem>>, vector<8x128xf32>,
    return
  }
  func.func @transform_0(%arg0: i32) -> (i32, i32) {
    %c0_i32 = arith.constant 0 : i32
    %c0_i32_0 = arith.constant 0 : i32
    return %arg0, %c0_i32 : i32, i32
  }
  func.func @transform_1(%arg0: i32) -> (i32, i32) {
    %c0_i32 = arith.constant 0 : i32
    %c0_i32_0 = arith.constant 0 : i32
    return %arg0, %c0_i32 : i32, i32
  }
  func.func @transform_2(%arg0: i32) -> (i32, i32) {
    %c0_i32 = arith.constant 0 : i32
    %c0_i32_0 = arith.constant 0 : i32
    %c0_i32_1 = arith.constant 0 : i32
    return %c0_i32, %c0_i32_0 : i32, i32
  }
  func.func @transform_3(%arg0: i32) -> (i32, i32) {
    %c0_i32 = arith.constant 0 : i32
    %c0_i32_0 = arith.constant 0 : i32
    %c0_i32_1 = arith.constant 0 : i32
    return %c0_i32, %c0_i32_0 : i32, i32
  }
  func.func @transform_4(%arg0: i32) -> (i32, i32) {
    %c0_i32 = arith.constant 0 : i32
    %c0_i32_0 = arith.constant 0 : i32
    %c0_i32_1 = arith.constant 0 : i32
    return %c0_i32, %c0_i32_0 : i32, i32
  }
  func.func @transform_5(%arg0: i32) -> (i32, i32) {
    %c0_i32 = arith.constant 0 : i32
    %c0_i32_0 = arith.constant 0 : i32
    %c0_i32_1 = arith.constant 0 : i32
    return %c0_i32, %c0_i32_0 : i32, i32
  }
  func.func @transform_6(%arg0: i32) -> (i32, i32) {
    %c0_i32 = arith.constant 0 : i32
    %c0_i32_0 = arith.constant 0 : i32
    return %arg0, %c0_i32 : i32, i32
  }
}

</mosaic_0001>

<llo_original>
// kernel: tpu_custom_call.1
$region0: #{tpu_custom_call.1}
  #allocation0 [shape = 'u32[]', space=smem, size = 0x4, offset = 0x4, fixed_abs, tag = 'smem constant byte address 0x4 - core index']
  #allocation1 [shape = 'u32[144,128]{1,0:T(1,128)}', space=vmem, size = 0x12000, scoped, tag = 'internal scratch']
  %s0 = inlined_call_operand.hbm [shape: f32[8,32], index: 0, kind: input, shape index: {}]
  %s1 = inlined_call_operand.hbm [shape: f32[8,128], index: 1, kind: input, shape index: {}]
  %s2 = inlined_call_operand.hbm [shape: f32[32,256], index: 2, kind: input, shape index: {}]
  %s3 = inlined_call_operand.vmem [shape: f32[1,256], index: 3, kind: input, shape index: {}]
  %s4 = inlined_call_operand.hbm [shape: f32[128,128], index: 4, kind: input, shape index: {}]
  %s5 = inlined_call_operand.vmem [shape: f32[1,128], index: 5, kind: input, shape index: {}]
  %s6 = inlined_call_operand.hbm [shape: f32[8,128], index: 6, kind: output, shape index: {}]
  %s7 = sld [smem:[#allocation0]]
  $region50: #{tpu_custom_call.1} parent=0
    _
  %s9 = ssub.s32 1, %s7
  %s10 = scalar_select 0, %s9, %s7
  $region1: #{tpu_custom_call.1} parent=0
    #allocation2 [shape = 'u8[4096]{0}', space=vmem, size = 0x1000, scoped, tag = 'input window, operand 0, single buffered']
    #allocation3 [shape = 's32[1]{0}', space=sflag, size = 0x4, scoped, tag = 'scoped memory for tpu_custom_call.1']
    #allocation4 [shape = 's32[1]{0}', space=sflag, size = 0x4, scoped, tag = 'scoped memory for tpu_custom_call.1']
    #allocation5 [shape = 'u8[4096]{0}', space=vmem, size = 0x1000, scoped, tag = 'input window, operand 1, single buffered']
    #allocation6 [shape = 's32[1]{0}', space=sflag, size = 0x4, scoped, tag = 'scoped memory for tpu_custom_call.1']
    #allocation7 [shape = 'u8[32768]{0}', space=vmem, size = 0x8000, scoped, tag = 'input window, operand 2, single buffered']
    #allocation8 [shape = 'u8[65536]{0}', space=vmem, size = 0x10000, scoped, tag = 'input window, operand 4, single buffered']
    #allocation9 [shape = 's32[1]{0}', space=sflag, size = 0x4, scoped, tag = 'scoped memory for tpu_custom_call.1']
    #allocation10 [shape = 'u8[4096]{0}', space=vmem, size = 0x1000, scoped, tag = 'output window, operand 0, single buffered']
    %11 = vsyncpa [#allocation3], 0
    %12 = vsyncpa [#allocation6], 0
    %13 = vsyncpa [#allocation9], 0
    %14 = vsyncpa [#allocation4], 0
    // Predicated region
    $region2: #{tpu_custom_call.1} parent=1 // pred_check
      _
    $region3: #{tpu_custom_call.1} parent=1 // pred_check_branch
      %16 = sbr.rel (0) target = $region5
    $region4: #{tpu_custom_call.1} parent=1 // pred_region
      %s18 = ssub.s32 128, 128
      %19 = vsyncadd [#allocation3], %s18
      %s21 = sshll.u32 [#allocation2], 4
      %s22 = int_to_ptr.vmem [resolvable:$true] %s21
      %24 = dma.hbm_to_vmem [thread:$0]  %s0, 128, %s22, [#allocation3]
    $region5: #{tpu_custom_call.1} parent=1 // pred_fallthru
      _
    // Predicated region
    $region6: #{tpu_custom_call.1} parent=1 // pred_check
      _
    $region7: #{tpu_custom_call.1} parent=1 // pred_check_branch
      %26 = sbr.rel (0) target = $region9
    $region8: #{tpu_custom_call.1} parent=1 // pred_region
      %s28 = ssub.s32 128, 128
      %29 = vsyncadd [#allocation6], %s28
      %s31 = sshll.u32 [#allocation5], 4
      %s32 = int_to_ptr.vmem [resolvable:$true] %s31
      %34 = dma.hbm_to_vmem [thread:$0]  %s1, 128, %s32, [#allocation6]
    $region9: #{tpu_custom_call.1} parent=1 // pred_fallthru
      _
    // Predicated region
    $region10: #{tpu_custom_call.1} parent=1 // pred_check
      _
    $region11: #{tpu_custom_call.1} parent=1 // pred_check_branch
      %36 = sbr.rel (0) target = $region13
    $region12: #{tpu_custom_call.1} parent=1 // pred_region
      %s38 = ssub.s32 1024, 1024
      %39 = vsyncadd [#allocation6], %s38
      %s40 = sshll.u32 [#allocation7], 4
      %s41 = int_to_ptr.vmem [resolvable:$true] %s40
      %46 = dma.hbm_to_vmem [thread:$0]  %s2, 1024, %s41, [#allocation6], 256, 256, 16
    $region13: #{tpu_custom_call.1} parent=1 // pred_fallthru
      _
    // Predicated region
    $region14: #{tpu_custom_call.1} parent=1 // pred_check
      _
    $region15: #{tpu_custom_call.1} parent=1 // pred_check_branch
      %48 = sbr.rel (0) target = $region17
    $region16: #{tpu_custom_call.1} parent=1 // pred_region
      _
    $region17: #{tpu_custom_call.1} parent=1 // pred_fallthru
      _
    // Predicated region
    $region18: #{tpu_custom_call.1} parent=1 // pred_check
      _
    $region19: #{tpu_custom_call.1} parent=1 // pred_check_branch
      %50 = sbr.rel (0) target = $region21
    $region20: #{tpu_custom_call.1} parent=1 // pred_region
      %s52 = ssub.s32 2048, 2048
      %53 = vsyncadd [#allocation9], %s52
      %s54 = sshll.u32 [#allocation8], 4
      %s55 = int_to_ptr.vmem [resolvable:$true] %s54
      %60 = dma.hbm_to_vmem [thread:$0]  %s4, 2048, %s55, [#allocation9], 128, 128, 8
    $region21: #{tpu_custom_call.1} parent=1 // pred_fallthru
      _
    // Predicated region
    $region22: #{tpu_custom_call.1} parent=1 // pred_check
      _
    $region23: #{tpu_custom_call.1} parent=1 // pred_check_branch
      %62 = sbr.rel (0) target = $region25
    $region24: #{tpu_custom_call.1} parent=1 // pred_region
      _
    $region25: #{tpu_custom_call.1} parent=1 // pred_fallthru
      _
    // Predicated region
    $region26: #{tpu_custom_call.1} parent=1 // pred_check
      _
    $region27: #{tpu_custom_call.1} parent=1 // pred_check_branch
      %64 = sbr.rel (0) target = $region29
    $region28: #{tpu_custom_call.1} parent=1 // pred_region
      %65 = dma.done [#allocation3], 128
    $region29: #{tpu_custom_call.1} parent=1 // pred_fallthru
      _
    // Predicated region
    $region30: #{tpu_custom_call.1} parent=1 // pred_check
      _
    $region31: #{tpu_custom_call.1} parent=1 // pred_check_branch
      %67 = sbr.rel (0) target = $region33
    $region32: #{tpu_custom_call.1} parent=1 // pred_region
      %68 = dma.done [#allocation6], 128
    $region33: #{tpu_custom_call.1} parent=1 // pred_fallthru
      _
    // Predicated region
    $region34: #{tpu_custom_call.1} parent=1 // pred_check
      _
    $region35: #{tpu_custom_call.1} parent=1 // pred_check_branch
      %70 = sbr.rel (0) target = $region37
    $region36: #{tpu_custom_call.1} parent=1 // pred_region
      %71 = dma.done [#allocation6], 1024
    $region37: #{tpu_custom_call.1} parent=1 // pred_fallthru
      _
    // Predicated region
    $region38: #{tpu_custom_call.1} parent=1 // pred_check
      _
    $region39: #{tpu_custom_call.1} parent=1 // pred_check_branch
      %73 = sbr.rel (0) target = $region41
    $region40: #{tpu_custom_call.1} parent=1 // pred_region
      %74 = dma.done [#allocation9], 2048
    $region41: #{tpu_custom_call.1} parent=1 // pred_fallthru
      _
    %v75 = vld [vmem:[#allocation2] sm:$0xff]
    %v76 = vld [vmem:[#allocation7] sm:$0xff]
    %v77 = vld [vmem:[#allocation7 + $0x8] sm:$0xff]
    %v78 = vld [vmem:[#allocation7 + $0x10] sm:$0xff]
    %v79 = vld [vmem:[#allocation7 + $0x18] sm:$0xff]
    %v80 = vld [vmem:[#allocation7 + $0x20] sm:$0xff]
    %v81 = vld [vmem:[#allocation7 + $0x28] sm:$0xff]
    %v82 = vld [vmem:[#allocation7 + $0x30] sm:$0xff]
    %v83 = vld [vmem:[#allocation7 + $0x38] sm:$0xff]
    %v84 = vld [vmem:[%s3] sm:$0x3]
    %v86 = vlaneseq
    %v87 = vshrl.u32 %v86, 7
    %v88 = vsub.s32 0, %v87
    %v89 = vrot.slane %v84, %v88
    %v90 = vlaneseq
    %v91 = vshrl.u32 %v90, 7
    %v92 = vsub.s32 1, %v91
    %v93 = vrot.slane %v84, %v92
    %vm96 = vcmask 261120
    %v98 = vsel %vm96, %v75, 0
    %100 = vmatprep.subr.mxu0 %v77
    %101 = vmatpush1.msra.mxu0 %v76
    %102 = vmatprep.subr.mxu0 %v79
    %103 = vmatpush1.msra.mxu0 %v78
    %104 = vmatprep.subr.mxu0 %v81
    %105 = vmatpush1.msra.mxu0 %v80
    %106 = vmatprep.subr.mxu0 %v83
    %107 = vmatpush1.msra.mxu0 %v82
    %108 = vmatprep.subr.mxu0 0.0
    %109 = vmatpush1.msra.mxu0 0.0
    %110 = vmatprep.subr.mxu0 0.0
    %111 = vmatpush1.msra.mxu0 0.0
    %112 = vmatprep.subr.mxu0 0.0
    %113 = vmatpush1.msra.mxu0 0.0
    %114 = vmatprep.subr.mxu0 0.0
    %115 = vmatpush1.msra.mxu0 0.0
    %116 = vmatprep.subr.mxu0 0.0
    %117 = vmatpush1.msra.mxu0 0.0
    %118 = vmatprep.subr.mxu0 0.0
    %119 = vmatpush1.msra.mxu0 0.0
    %120 = vmatprep.subr.mxu0 0.0
    %121 = vmatpush1.msra.mxu0 0.0
    %122 = vmatprep.subr.mxu0 0.0
    %123 = vmatpush1.msra.mxu0 0.0
    %124 = vmatprep.subr.mxu0 0.0
    %125 = vmatpush1.msra.mxu0 0.0
    %126 = vmatprep.subr.mxu0 0.0
    %127 = vmatpush1.msra.mxu0 0.0
    %128 = vmatprep.subr.mxu0 0.0
    %129 = vmatpush1.msra.mxu0 0.0
    %130 = vmatprep.subr.mxu0 0.0
    %131 = vmatpush1.msra.mxu0 0.0
    %132 = vmatprep.subr.mxu0 0.0
    %133 = vmatpush1.msra.mxu0 0.0
    %134 = vmatprep.subr.mxu0 0.0
    %135 = vmatpush1.msra.mxu0 0.0
    %136 = vmatprep.subr.mxu0 0.0
    %137 = vmatpush1.msra.mxu0 0.0
    %138 = vmatprep.subr.mxu0 0.0
    %139 = vmatpush1.msra.mxu0 0.0
    %140 = vmatprep.subr.mxu0 0.0
    %141 = vmatpush1.msra.mxu0 0.0
    %142 = vmatprep.subr.mxu0 0.0
    %143 = vmatpush1.msra.mxu0 0.0
    %144 = vmatprep.subr.mxu0 0.0
    %145 = vmatpush1.msra.mxu0 0.0
    %146 = vmatprep.subr.mxu0 0.0
    %147 = vmatpush1.msra.mxu0 0.0
    %148 = vmatprep.subr.mxu0 0.0
    %149 = vmatpush1.msra.mxu0 0.0
    %150 = vmatprep.subr.mxu0 0.0
    %151 = vmatpush1.msra.mxu0 0.0
    %152 = vmatprep.subr.mxu0 0.0
    %153 = vmatpush1.msra.mxu0 0.0
    %154 = vmatprep.subr.mxu0 0.0
    %155 = vmatpush1.msra.mxu0 0.0
    %156 = vmatprep.subr.mxu0 0.0
    %157 = vmatpush1.msra.mxu0 0.0
    %158 = vmatprep.subr.mxu0 0.0
    %159 = vmatpush1.msra.mxu0 0.0
    %160 = vmatprep.subr.mxu0 0.0
    %161 = vmatpush1.msra.mxu0 0.0
    %162 = vmatprep.subr.mxu0 0.0
    %163 = vmatpush1.msra.mxu0 0.0
    %164 = vmatprep.mubr.f32.mxu0 0.0
    %165 = vmatmul.mubr.f32.gmra.mrb[0].mxu0 %v98
    %v166 = vpop.f32.mrb[0].mxu0
    %v167 = vadd.f32 %v89, %v166
    %v168 = vpop.f32.mrb[0].mxu0
    %v169 = vadd.f32 %v93, %v168
    %170 = vdwg.mxu0
    %v171 = vld [vmem:[#allocation5] sm:$0xff]
    %v172 = vmul.f32 %v167, %v171
    %v173 = vadd.f32 %v172, %v169
    %v174 = vld [vmem:[#allocation8] sm:$0xff]
    %v175 = vld [vmem:[#allocation8 + $0x8] sm:$0xff]
    %v176 = vld [vmem:[#allocation8 + $0x10] sm:$0xff]
    %v177 = vld [vmem:[#allocation8 + $0x18] sm:$0xff]
    %v178 = vld [vmem:[#allocation8 + $0x20] sm:$0xff]
    %v179 = vld [vmem:[#allocation8 + $0x28] sm:$0xff]
    %v180 = vld [vmem:[#allocation8 + $0x30] sm:$0xff]
    %v181 = vld [vmem:[#allocation8 + $0x38] sm:$0xff]
    %v182 = vld [vmem:[#allocation8 + $0x40] sm:$0xff]
    %v183 = vld [vmem:[#allocation8 + $0x48] sm:$0xff]
    %v184 = vld [vmem:[#allocation8 + $0x50] sm:$0xff]
    %v185 = vld [vmem:[#allocation8 + $0x58] sm:$0xff]
    %v186 = vld [vmem:[#allocation8 + $0x60] sm:$0xff]
    %v187 = vld [vmem:[#allocation8 + $0x68] sm:$0xff]
    %v188 = vld [vmem:[#allocation8 + $0x70] sm:$0xff]
    %v189 = vld [vmem:[#allocation8 + $0x78] sm:$0xff]
    %v190 = vld [vmem:[%s5] sm:$0x1]
    %v192 = vlaneseq
    %v193 = vshrl.u32 %v192, 7
    %v194 = vsub.s32 0, %v193
    %v195 = vrot.slane %v190, %v194
    %197 = vmatprep.subr.mxu0 0.0
    %198 = vmatpush1.msra.mxu0 %v174
    %199 = vmatprep.subr.mxu0 0.0
    %200 = vmatpush1.msra.mxu0 %v175
    %201 = vmatprep.subr.mxu0 0.0
    %202 = vmatpush1.msra.mxu0 %v176
    %203 = vmatprep.subr.mxu0 0.0
    %204 = vmatpush1.msra.mxu0 %v177
    %205 = vmatprep.subr.mxu0 0.0
    %206 = vmatpush1.msra.mxu0 %v178
    %207 = vmatprep.subr.mxu0 0.0
    %208 = vmatpush1.msra.mxu0 %v179
    %209 = vmatprep.subr.mxu0 0.0
    %210 = vmatpush1.msra.mxu0 %v180
    %211 = vmatprep.subr.mxu0 0.0
    %212 = vmatpush1.msra.mxu0 %v181
    %213 = vmatprep.subr.mxu0 0.0
    %214 = vmatpush1.msra.mxu0 %v182
    %215 = vmatprep.subr.mxu0 0.0
    %216 = vmatpush1.msra.mxu0 %v183
    %217 = vmatprep.subr.mxu0 0.0
    %218 = vmatpush1.msra.mxu0 %v184
    %219 = vmatprep.subr.mxu0 0.0
    %220 = vmatpush1.msra.mxu0 %v185
    %221 = vmatprep.subr.mxu0 0.0
    %222 = vmatpush1.msra.mxu0 %v186
    %223 = vmatprep.subr.mxu0 0.0
    %224 = vmatpush1.msra.mxu0 %v187
    %225 = vmatprep.subr.mxu0 0.0
    %226 = vmatpush1.msra.mxu0 %v188
    %227 = vmatprep.subr.mxu0 0.0
    %228 = vmatpush1.msra.mxu0 %v189
    %229 = vmatprep.subr.mxu0 0.0
    %230 = vmatpush1.msra.mxu0 0.0
    %231 = vmatprep.subr.mxu0 0.0
    %232 = vmatpush1.msra.mxu0 0.0
    %233 = vmatprep.subr.mxu0 0.0
    %234 = vmatpush1.msra.mxu0 0.0
    %235 = vmatprep.subr.mxu0 0.0
    %236 = vmatpush1.msra.mxu0 0.0
    %237 = vmatprep.subr.mxu0 0.0
    %238 = vmatpush1.msra.mxu0 0.0
    %239 = vmatprep.subr.mxu0 0.0
    %240 = vmatpush1.msra.mxu0 0.0
    %241 = vmatprep.subr.mxu0 0.0
    %242 = vmatpush1.msra.mxu0 0.0
    %243 = vmatprep.subr.mxu0 0.0
    %244 = vmatpush1.msra.mxu0 0.0
    %245 = vmatprep.subr.mxu0 0.0
    %246 = vmatpush1.msra.mxu0 0.0
    %247 = vmatprep.subr.mxu0 0.0
    %248 = vmatpush1.msra.mxu0 0.0
    %249 = vmatprep.subr.mxu0 0.0
    %250 = vmatpush1.msra.mxu0 0.0
    %251 = vmatprep.subr.mxu0 0.0
    %252 = vmatpush1.msra.mxu0 0.0
    %253 = vmatprep.subr.mxu0 0.0
    %254 = vmatpush1.msra.mxu0 0.0
    %255 = vmatprep.subr.mxu0 0.0
    %256 = vmatpush1.msra.mxu0 0.0
    %257 = vmatprep.subr.mxu0 0.0
    %258 = vmatpush1.msra.mxu0 0.0
    %259 = vmatprep.subr.mxu0 0.0
    %260 = vmatpush1.msra.mxu0 0.0
    %261 = vmatprep.mubr.f32.mxu0 0.0
    %262 = vmatmul.mubr.f32.gmra.mrb[0].mxu0 %v173
    %v263 = vpop.f32.mrb[0].mxu0
    %v264 = vadd.f32 %v195, %v263
    %v265 = vpop.f32.mrb[0].mxu0
    %266 = vdwg.mxu0
    %267 = vst [vmem:[#allocation10] sm:$0xff] %v264
    // Predicated region
    $region42: #{tpu_custom_call.1} parent=1 // pred_check
      _
    $region43: #{tpu_custom_call.1} parent=1 // pred_check_branch
      %269 = sbr.rel (0) target = $region45
    $region44: #{tpu_custom_call.1} parent=1 // pred_region
      %s271 = ssub.s32 128, 128
      %272 = vsyncadd [#allocation4], %s271
      %s274 = sshll.u32 [#allocation10], 4
      %s275 = int_to_ptr.vmem [resolvable:$true] %s274
      %277 = dma.vmem_to_hbm [thread:$0]  %s275, 128, %s6, [#allocation4]
    $region45: #{tpu_custom_call.1} parent=1 // pred_fallthru
      _
    // Predicated region
    $region46: #{tpu_custom_call.1} parent=1 // pred_check
      _
    $region47: #{tpu_custom_call.1} parent=1 // pred_check_branch
      %279 = sbr.rel (0) target = $region49
    $region48: #{tpu_custom_call.1} parent=1 // pred_region
      %280 = dma.done [#allocation4], 128
    $region49: #{tpu_custom_call.1} parent=1 // pred_fallthru
      _
    %281 = vsyncpa [#allocation3], 1
    %282 = vsyncpa [#allocation6], 1
    %283 = vsyncpa [#allocation9], 1
    %284 = vsyncpa [#allocation4], 1

</llo_original>
